<compile_context>
chip_gen: v7x
topology: tpu7x:2x2x1
jax: 0.10.0
libtpu: 0.0.40
codegen_flags: <defaults>
</compile_context>

<pallas_src>
import math

import jax
import jax.numpy as jnp
import numpy as np
from jax.experimental import pallas as pl
from jax.experimental.pallas import tpu as pltpu


def tcl_kernel(f1b_ref, w23t_ref, x_ref, o_ref):
    # f1b_ref : (TB*R1, TB*D1)  f32   block-diagonal kron(I_TB, factor1)
    # w23t_ref: (D2*D3, R2*R3)  bf16  kron(factor2, factor3)^T
    # x_ref   : (TB*D1, D2*D3)  input dtype, rows (b, p)-major, lane-dense
    # o_ref   : (1, TB*R1, R2*R3)      output slab, rows (b, i)-major

    # Fused modes 2+3: one lane-dense MXU matmul, K = D2*D3, bf16 in / f32 acc.
    xb = x_ref[...].astype(jnp.bfloat16)
    z = jnp.dot(xb, w23t_ref[...], preferred_element_type=jnp.float32)

    # Mode 1: single block-diagonal MXU matmul -> one push + one full-slab store
    # per grid step (kept in f32: it is tiny and the kernel is HBM-bound).
    o = jnp.dot(f1b_ref[...], z, preferred_element_type=jnp.float32)
    o_ref[0] = o.astype(o_ref.dtype)


def _pick_batch_tile(B, D1, row_bytes, *, target_rows=1024, vmem_budget=24 << 20):
    """Pick the batch tile TB.

    Constraints / goals:
      * (TB * D1) % 8 == 0 so the lane-dense x block satisfies the (8, 128) rule
        (the wrapper zero-pads the batch to a multiple of TB).
      * Block rows TB*D1 capped by a double-buffered VMEM budget and a ~1k-row
        target (measured HBM-roofline sweet spot).
      * Prefer >= 2 grid steps so both v7x TensorCores get work.
    """
    tb_unit = 8 // math.gcd(D1, 8)          # smallest TB with (TB*D1) % 8 == 0
    if B <= tb_unit:
        return B                             # single block; full-dim exemption
    unit_rows = tb_unit * D1
    cap_rows = max(unit_rows,
                   min(target_rows, vmem_budget // max(1, 2 * row_bytes)))
    tb = max(tb_unit, (cap_rows // unit_rows) * tb_unit)
    # keep >= 2 grid steps when the batch allows it (v7x has 2 TensorCores)
    half_b = max(tb_unit, (((B + 1) // 2) // tb_unit) * tb_unit)
    return min(tb, half_b)


def tcl_forward(x, f1, f2, f3, *, batch_tile=None):
    """out[b,i,j,k] = sum_{p,q,r} x[b,p,q,r] * f1[i,p] * f2[j,q] * f3[k,r]."""
    B, D1, D2, D3 = x.shape
    R1, R2, R3 = f1.shape[0], f2.shape[0], f3.shape[0]
    assert f1.shape == (R1, D1) and f2.shape == (R2, D2) and f3.shape == (R3, D3)
    M23 = D2 * D3
    N = R2 * R3
    itemsize = jnp.dtype(x.dtype).itemsize

    if batch_tile is None:
        TB = _pick_batch_tile(B, D1, M23 * itemsize)
    else:
        TB = int(batch_tile)
    assert (TB * D1) % 8 == 0 or TB >= B, (
        "batch_tile * D1 must be a multiple of 8 (or cover the whole batch)")

    # Pad the batch (with zeros) to a multiple of TB instead of blowing the
    # block up to the whole batch for awkward/prime B.
    Bp = pl.cdiv(B, TB) * TB
    xp = x if Bp == B else jnp.pad(x, ((0, Bp - B), (0, 0), (0, 0), (0, 0)))
    steps = Bp // TB

    # Free layout plumbing outside the kernel: lane-dense x + tiny fused factors.
    x2 = xp.reshape(Bp * D1, M23)                               # (Bp*D1, D2*D3)
    w23t = jnp.kron(f2, f3).T.astype(jnp.bfloat16)              # (D2*D3, R2*R3)
    f1b = jnp.kron(jnp.eye(TB, dtype=f1.dtype), f1)             # (TB*R1, TB*D1)

    # VMEM sizing (inputs/outputs are double-buffered); keep <= 48 MiB so the
    # same choice leaves headroom under v7x's 64 MiB physical VMEM.
    block_bytes = 2 * (TB * D1 * M23 * itemsize                 # x block
                       + TB * R1 * N * itemsize                 # out block
                       + f1b.size * f1b.dtype.itemsize          # factor blocks
                       + w23t.size * w23t.dtype.itemsize)
    vmem_limit = int(min(48 << 20, max(16 << 20, 4 * block_bytes)))

    flops = (2 * (Bp * D1) * M23 * N                            # fused modes 2+3
             + 2 * steps * (TB * R1) * (TB * D1) * N)           # block-diag mode 1
    bytes_accessed = (x2.size * itemsize + Bp * R1 * N * itemsize
                      + f1b.size * f1b.dtype.itemsize
                      + w23t.size * w23t.dtype.itemsize)

    out3 = pl.pallas_call(
        tcl_kernel,
        out_shape=jax.ShapeDtypeStruct((steps, TB * R1, N), x.dtype),
        grid=(steps,),
        in_specs=[
            pl.BlockSpec((TB * R1, TB * D1), lambda b: (0, 0)),   # F1B (resident)
            pl.BlockSpec((M23, N), lambda b: (0, 0)),             # W23T (resident)
            pl.BlockSpec((TB * D1, M23), lambda b: (b, 0)),        # x batch tile
        ],
        out_specs=pl.BlockSpec((1, TB * R1, N), lambda b: (b, 0, 0)),
        compiler_params=pltpu.CompilerParams(
            dimension_semantics=("parallel",),
            vmem_limit_bytes=vmem_limit,
        ),
        cost_estimate=pl.CostEstimate(
            flops=flops, transcendentals=0, bytes_accessed=bytes_accessed),
    )(f1b, w23t, x2)

    # Rows inside a block are (b_local, i)-major and blocks are batch-major, so
    # reshaping back to the module's (B, R1, R2, R3) layout is free.
    out = out3.reshape(Bp, R1, R2, R3)
    return out if Bp == B else out[:B]


if __name__ == "__main__":
    # Small shapes consistent with the module:
    #   weight_size == x.shape == (B, D1, D2, D3), ranks = (R0, R1, R2, R3)
    B, D1, D2, D3 = 4, 4, 16, 16
    ranks = (2, 3, 8, 8)

    key = jax.random.PRNGKey(0)
    kx, k0, k1, k2, k3 = jax.random.split(key, 5)

    x = jax.random.normal(kx, (B, D1, D2, D3), dtype=jnp.float32)
    # Parameters (torch.randn equivalents)
    factor0 = jax.random.normal(k0, (ranks[0], B), dtype=jnp.float32)   # unused in forward (matches PyTorch)
    factor1 = jax.random.normal(k1, (ranks[1], D1), dtype=jnp.float32)
    factor2 = jax.random.normal(k2, (ranks[2], D2), dtype=jnp.float32)
    factor3 = jax.random.normal(k3, (ranks[3], D3), dtype=jnp.float32)

    out = tcl_forward(x, factor1, factor2, factor3)
    out = jax.block_until_ready(out)

    # Pure-JAX f32 reference for the three mode_dots.
    ref = jnp.einsum("bpqr,ip,jq,kr->bijk", x, factor1, factor2, factor3)
    ref = jax.block_until_ready(ref)

    assert out.shape == (B, ranks[1], ranks[2], ranks[3])

    # The dominant matmul uses bf16 operands (f32 accumulation), so elementwise
    # error scales with the magnitude of the summed terms rather than the
    # (possibly cancelled) output value -> use a scale-aware absolute tolerance.
    out_np = np.asarray(out, dtype=np.float64)
    ref_np = np.asarray(ref, dtype=np.float64)
    scale = float(np.abs(ref_np).max())
    np.testing.assert_allclose(out_np, ref_np, rtol=2e-2, atol=2e-2 * scale)

    # TODO(synk): penalty() (L2 norm of factor1) is a training-time regularizer,
    # not part of forward; not implemented as a kernel.
    print("KERNEL_OK")
</pallas_src>

<mosaic_0001>
module attributes {stable_mosaic.version = 11 : i64} {
  func.func @tcl_kernel(%arg0: i32, %arg1: memref<6x8xf32, #tpu.memory_space<vmem>>, %arg2: memref<256x64xbf16, #tpu.memory_space<vmem>>, %arg3: memref<8x256xf32, #tpu.memory_space<vmem>>, %arg4: memref<1x6x64xf32, #tpu.memory_space<vmem>>) attributes {dimension_semantics = [#tpu.dimension_semantics<parallel>], iteration_bounds = array<i64: 2>, scalar_prefetch = 0 : i64, scratch_operands = 0 : i64, tpu.core_type = #tpu.core_type<tc>, window_params = [{pipeline_mode = #tpu.pipeline_mode<synchronous>, transform_indices = @transform_0, window_bounds = array<i64: 6, 8>}, {pipeline_mode = #tpu.pipeline_mode<synchronous>, transform_indices = @transform_1, window_bounds = array<i64: 256, 64>}, {transform_indices = @transform_2, window_bounds = array<i64: 8, 256>}, {transform_indices = @transform_3, window_bounds = array<i64: 1, 6, 64>}]} {
    %c0 = arith.constant 0 : index
    %c0_0 = arith.constant 0 : index
    %0 = vector.load %arg3[%c0, %c0_0] : memref<8x256xf32, #tpu.memory_space<vmem>>, vector<8x256xf32>
    %1 = arith.truncf %0 : vector<8x256xf32> to vector<8x256xbf16>
    %c0_1 = arith.constant 0 : index
    %c0_2 = arith.constant 0 : index
    %2 = vector.load %arg2[%c0_1, %c0_2] : memref<256x64xbf16, #tpu.memory_space<vmem>>, vector<256x64xbf16>
    %cst = arith.constant dense<0.000000e+00> : vector<8x64xf32>
    %3 = tpu.matmul %1, %2, %cst {dimension_numbers = #tpu.dot_dimension_numbers<[1], [0], [0], [1], [0, 0, 1, 1], [], []>} : vector<8x256xbf16>, vector<256x64xbf16>, vector<8x64xf32> -> vector<8x64xf32>
    %c0_3 = arith.constant 0 : index
    %c0_4 = arith.constant 0 : index
    %4 = vector.load %arg1[%c0_3, %c0_4] : memref<6x8xf32, #tpu.memory_space<vmem>>, vector<6x8xf32>
    %cst_5 = arith.constant dense<0.000000e+00> : vector<6x64xf32>
    %5 = tpu.matmul %4, %3, %cst_5 {dimension_numbers = #tpu.dot_dimension_numbers<[1], [0], [0], [1], [0, 0, 1, 1], [], []>} : vector<6x8xf32>, vector<8x64xf32>, vector<6x64xf32> -> vector<6x64xf32>
    %c0_6 = arith.constant 0 : index
    %c0_7 = arith.constant 0 : index
    %c0_8 = arith.constant 0 : index
    %6 = vector.load %arg4[%c0_6, %c0_7, %c0_8] : memref<1x6x64xf32, #tpu.memory_space<vmem>>, vector<1x6x64xf32>
    %7 = vector.shape_cast %6 : vector<1x6x64xf32> to vector<6x64xf32>
    %8 = vector.shape_cast %5 : vector<6x64xf32> to vector<1x6x64xf32>
    tpu.vector_store %arg4[%c0_6, %c0_7, %c0_8], %8 {strides = array<i32>} : memref<1x6x64xf32, #tpu.memory_space<vmem>>, vector<1x6x64xf32>,
    return
  }
  func.func @transform_0(%arg0: i32) -> (i32, i32) {
    %c0_i32 = arith.constant 0 : i32
    %c0_i32_0 = arith.constant 0 : i32
    %c0_i32_1 = arith.constant 0 : i32
    return %c0_i32, %c0_i32_0 : i32, i32
  }
  func.func @transform_1(%arg0: i32) -> (i32, i32) {
    %c0_i32 = arith.constant 0 : i32
    %c0_i32_0 = arith.constant 0 : i32
    %c0_i32_1 = arith.constant 0 : i32
    return %c0_i32, %c0_i32_0 : i32, i32
  }
  func.func @transform_2(%arg0: i32) -> (i32, i32) {
    %c0_i32 = arith.constant 0 : i32
    %c0_i32_0 = arith.constant 0 : i32
    return %arg0, %c0_i32 : i32, i32
  }
  func.func @transform_3(%arg0: i32) -> (i32, i32, i32) {
    %c0_i32 = arith.constant 0 : i32
    %c0_i32_0 = arith.constant 0 : i32
    %c0_i32_1 = arith.constant 0 : i32
    return %arg0, %c0_i32, %c0_i32_0 : i32, i32, i32
  }
}

</mosaic_0001>

<llo_original>
// kernel: tpu_custom_call.1
$region0: #{tpu_custom_call.1}
  #allocation0 [shape = 'u32[]', space=smem, size = 0x4, offset = 0x4, fixed_abs, tag = 'smem constant byte address 0x4 - core index']
  #allocation1 [shape = 'u32[144,128]{1,0:T(1,128)}', space=vmem, size = 0x12000, scoped, tag = 'internal scratch']
  %s0 = inlined_call_operand.vmem [shape: f32[6,8], index: 0, kind: input, shape index: {}]
  %s1 = inlined_call_operand.vmem [shape: bf16[256,64], index: 1, kind: input, shape index: {}]
  %s2 = inlined_call_operand.vmem [shape: f32[16,256], index: 2, kind: input, shape index: {}]
  %s3 = inlined_call_operand.vmem [shape: f32[2,6,64], index: 3, kind: output, shape index: {}]
  %s4 = sld [smem:[#allocation0]]
  $region45: #{tpu_custom_call.1} parent=0
    _
  %s6 = ssub.s32 1, %s4
  %s7 = scalar_select 0, %s6, %s4
  loop: start=0, step=1, limit=4
  $region2: #{tpu_custom_call.1} parent=0 // loop_pre_header
    _
  $region3: #{tpu_custom_call.1} parent=0 // loop_header
    %s9 = sphi 0, %s13
    %p10 = scmp.ge.s32.totalorder %s9, 4
    %s17 = sphi 0, %s17
    %s19 = sphi 0, %s17
    %s20 = sphi 0, %s19
    %s34 = sphi 0, %s20
    %s38 = sphi 0, %s38
    %s40 = sphi 0, %s38
    %s41 = sphi 0, %s40
    %s55 = sphi 0, %s41
    %s61 = sphi 0, %s63
    %s64 = sphi 0, %s61
    %s65 = sphi 0, %s64
    %s81 = sphi 0, %s65
    %s87 = sphi 0, %s89
    %s90 = sphi 0, %s87
    %s91 = sphi 0, %s90
    %s107 = sphi 0, %s91
  $region4: #{tpu_custom_call.1} parent=0 // loop_header_branch
    %12 = sbr.rel (%p10) target = $region8
  $region5: #{tpu_custom_call.1} parent=0 // loop_body
    %s14 = ssub.s32 %s9, 1
    %s15 = ssub.s32 %s9, 2
    %s16 = sadd.s32 %s9, 1
    %s18 = sadd.s32 %s17, 1
    %p21 = scmp.eq.s32.totalorder %s9, 1
    %p22 = scmp.ne.s32.totalorder %s17, %s19
    %p23 = scmp.eq.s32.totalorder %s9, 0
    %p24 = por %p22, %p23
    %p25 = scmp.ne.s32.totalorder %s17, %s19
    %p26 = scmp.eq.s32.totalorder %s14, 1
    %p27 = por %p25, %p26
    %p28 = scmp.ne.s32.totalorder %s19, %s20
    %p29 = scmp.eq.s32.totalorder %s14, 0
    %p30 = por %p28, %p29
    %p31 = scmp.ne.s32.totalorder %s19, %s20
    %p32 = scmp.eq.s32.totalorder %s15, 1
    %p33 = por %p31, %p32
    %p35 = scmp.ne.s32.totalorder %s20, %s34
    %p36 = scmp.eq.s32.totalorder %s15, 0
    %p37 = por %p35, %p36
    %s39 = sadd.s32 %s38, 1
    %p42 = scmp.eq.s32.totalorder %s9, 1
    %p43 = scmp.ne.s32.totalorder %s38, %s40
    %p44 = scmp.eq.s32.totalorder %s9, 0
    %p45 = por %p43, %p44
    %p46 = scmp.ne.s32.totalorder %s38, %s40
    %p47 = scmp.eq.s32.totalorder %s14, 1
    %p48 = por %p46, %p47
    %p49 = scmp.ne.s32.totalorder %s40, %s41
    %p50 = scmp.eq.s32.totalorder %s14, 0
    %p51 = por %p49, %p50
    %p52 = scmp.ne.s32.totalorder %s40, %s41
    %p53 = scmp.eq.s32.totalorder %s15, 1
    %p54 = por %p52, %p53
    %p56 = scmp.ne.s32.totalorder %s41, %s55
    %p57 = scmp.eq.s32.totalorder %s15, 0
    %p58 = por %p56, %p57
    %s59 = ssub.s32 %s9, %s16
    %p60 = scmp.eq.s32.totalorder %s59, 0
    %s62 = sadd.s32 %s61, 1
    %s63 = scalar_select %p60, %s61, %s62
    %p66 = pneg %p60
    %p67 = scmp.eq.s32.totalorder %s9, 1
    %p68 = por %p66, %p67
    %p69 = scmp.ne.s32.totalorder %s61, %s64
    %p70 = scmp.eq.s32.totalorder %s9, 0
    %p71 = por %p69, %p70
    %p72 = scmp.ne.s32.totalorder %s61, %s64
    %p73 = scmp.eq.s32.totalorder %s14, 1
    %p74 = por %p72, %p73
    %p75 = scmp.ne.s32.totalorder %s64, %s65
    %p76 = scmp.eq.s32.totalorder %s14, 0
    %p77 = por %p75, %p76
    %p78 = scmp.ne.s32.totalorder %s64, %s65
    %p79 = scmp.eq.s32.totalorder %s15, 1
    %p80 = por %p78, %p79
    %p82 = scmp.ne.s32.totalorder %s65, %s81
    %p83 = scmp.eq.s32.totalorder %s15, 0
    %p84 = por %p82, %p83
    %s85 = ssub.s32 %s9, %s16
    %p86 = scmp.eq.s32.totalorder %s85, 0
    %s88 = sadd.s32 %s87, 1
    %s89 = scalar_select %p86, %s87, %s88
    %p92 = pneg %p86
    %p93 = scmp.eq.s32.totalorder %s9, 1
    %p94 = por %p92, %p93
    %p95 = scmp.ne.s32.totalorder %s87, %s90
    %p96 = scmp.eq.s32.totalorder %s9, 0
    %p97 = por %p95, %p96
    %p98 = scmp.ne.s32.totalorder %s87, %s90
    %p99 = scmp.eq.s32.totalorder %s14, 1
    %p100 = por %p98, %p99
    %p101 = scmp.ne.s32.totalorder %s90, %s91
    %p102 = scmp.eq.s32.totalorder %s14, 0
    %p103 = por %p101, %p102
    %p104 = scmp.ne.s32.totalorder %s90, %s91
    %p105 = scmp.eq.s32.totalorder %s15, 1
    %p106 = por %p104, %p105
    %p108 = scmp.ne.s32.totalorder %s91, %s107
    %p109 = scmp.eq.s32.totalorder %s15, 0
    %p110 = por %p108, %p109
    %p111 = scmp.le.s32.totalorder 1, %s9
    %p112 = scmp.lt.s32.totalorder %s9, 3
    %p113 = pnand %p111, %p112
    %p114 = pneg %p113
    // Predicated region
    $region9: #{tpu_custom_call.1} parent=5 // pred_check
      _
    $region10: #{tpu_custom_call.1} parent=5 // pred_check_branch
      %116 = sbr.rel (%p113) target = $region12
    $region11: #{tpu_custom_call.1} parent=5 // pred_region
      %s117 = ssub.s32 %s9, 1
      // Predicated region
      $region13: #{tpu_custom_call.1} parent=11 // pred_check
        %p118 = pneg %p30
      $region14: #{tpu_custom_call.1} parent=11 // pred_check_branch
        %120 = sbr.rel (%p118) target = $region16
      $region15: #{tpu_custom_call.1} parent=11 // pred_region
        _
      $region16: #{tpu_custom_call.1} parent=11 // pred_fallthru
        _
      // Predicated region
      $region17: #{tpu_custom_call.1} parent=11 // pred_check
        %p121 = pneg %p51
      $region18: #{tpu_custom_call.1} parent=11 // pred_check_branch
        %123 = sbr.rel (%p121) target = $region20
      $region19: #{tpu_custom_call.1} parent=11 // pred_region
        _
      $region20: #{tpu_custom_call.1} parent=11 // pred_fallthru
        _
    $region12: #{tpu_custom_call.1} parent=5 // pred_fallthru
      _
    %p124 = scmp.lt.s32.totalorder %s9, 2
    // Predicated region
    $region21: #{tpu_custom_call.1} parent=5 // pred_check
      %p125 = pneg %p124
    $region22: #{tpu_custom_call.1} parent=5 // pred_check_branch
      %127 = sbr.rel (%p125) target = $region24
    $region23: #{tpu_custom_call.1} parent=5 // pred_region
      // Predicated region
      $region25: #{tpu_custom_call.1} parent=23 // pred_check
        %p128 = pneg %p71
      $region26: #{tpu_custom_call.1} parent=23 // pred_check_branch
        %130 = sbr.rel (%p128) target = $region28
      $region27: #{tpu_custom_call.1} parent=23 // pred_region
        %p131 = scmp.lt.s32.totalorder %s9, 1
        %s132 = scalar_select %p131, %s9, 1
        %s133 = smul.addr %s132, 2
        %s134 = smul.addr %s133, 8
        %s135 = scalar_lea.vmem %s2, %s134
      $region28: #{tpu_custom_call.1} parent=23 // pred_fallthru
        _
    $region24: #{tpu_custom_call.1} parent=5 // pred_fallthru
      _
    %p136 = scmp.le.s32.totalorder 1, %s9
    %p137 = scmp.lt.s32.totalorder %s9, 3
    %p138 = pnand %p136, %p137
    %p139 = pneg %p138
    // Predicated region
    $region29: #{tpu_custom_call.1} parent=5 // pred_check
      _
    $region30: #{tpu_custom_call.1} parent=5 // pred_check_branch
      %141 = sbr.rel (%p138) target = $region32
    $region31: #{tpu_custom_call.1} parent=5 // pred_region
      %s142 = ssub.s32 %s9, 1
      %p143 = pneg %p30
      %p144 = pneg %p27
      %p145 = pneg %p51
      %p146 = pneg %p48
      %p147 = scmp.lt.s32.totalorder %s14, 1
      %s148 = scalar_select %p147, %s14, 1
      %s149 = smul.addr %s148, 2
      %s150 = smul.addr %s149, 8
      %s151 = scalar_lea.vmem %s2, %s150
      %p152 = pneg %p77
      %p153 = pneg %p74
      %p154 = pneg %p103
      %p155 = pneg %p100
      %p156 = scmp.lt.s32.totalorder %s14, 1
      %s157 = scalar_select %p156, %s14, 1
      %s158 = smul.addr %s157, 8
      %s159 = scalar_lea.vmem %s3, %s158
      %p160 = scmp.lt.s32.totalorder %s14, 1
      %s161 = scalar_select %p160, %s14, 1
      %s162 = smul.addr %s161, 2
      %s163 = smul.addr %s162, 8
      %s164 = scalar_lea.vmem %s2, %s163
      %p165 = scmp.lt.s32.totalorder %s14, 1
      %s166 = scalar_select %p165, %s14, 1
      %s167 = smul.addr %s166, 8
      %s168 = scalar_lea.vmem %s3, %s167
      %v170 = vld [vmem:[%s164] sm:$0xff]
      %v171 = vld [vmem:[%s164 + $0x8] sm:$0xff]
      %v172 = vpack.c.bf16 %v170, %v170
      %v173 = vpack.c.bf16 %v171, %v171
      %v174 = vld [vmem:[%s1] sm:$0xf]
      %v175 = vld [vmem:[%s1 + $0x4] sm:$0xf]
      %v176 = vld [vmem:[%s1 + $0x8] sm:$0xf]
      %v177 = vld [vmem:[%s1 + $0xc] sm:$0xf]
      %v178 = vld [vmem:[%s1 + $0x10] sm:$0xf]
      %v179 = vld [vmem:[%s1 + $0x14] sm:$0xf]
      %v180 = vld [vmem:[%s1 + $0x18] sm:$0xf]
      %v181 = vld [vmem:[%s1 + $0x1c] sm:$0xf]
      %v182 = vld [vmem:[%s1 + $0x20] sm:$0xf]
      %v183 = vld [vmem:[%s1 + $0x24] sm:$0xf]
      %v184 = vld [vmem:[%s1 + $0x28] sm:$0xf]
      %v185 = vld [vmem:[%s1 + $0x2c] sm:$0xf]
      %v186 = vld [vmem:[%s1 + $0x30] sm:$0xf]
      %v187 = vld [vmem:[%s1 + $0x34] sm:$0xf]
      %v188 = vld [vmem:[%s1 + $0x38] sm:$0xf]
      %v189 = vld [vmem:[%s1 + $0x3c] sm:$0xf]
      %v190 = vld [vmem:[%s1 + $0x40] sm:$0xf]
      %v191 = vld [vmem:[%s1 + $0x44] sm:$0xf]
      %v192 = vld [vmem:[%s1 + $0x48] sm:$0xf]
      %v193 = vld [vmem:[%s1 + $0x4c] sm:$0xf]
      %v194 = vld [vmem:[%s1 + $0x50] sm:$0xf]
      %v195 = vld [vmem:[%s1 + $0x54] sm:$0xf]
      %v196 = vld [vmem:[%s1 + $0x58] sm:$0xf]
      %v197 = vld [vmem:[%s1 + $0x5c] sm:$0xf]
      %v198 = vld [vmem:[%s1 + $0x60] sm:$0xf]
      %v199 = vld [vmem:[%s1 + $0x64] sm:$0xf]
      %v200 = vld [vmem:[%s1 + $0x68] sm:$0xf]
      %v201 = vld [vmem:[%s1 + $0x6c] sm:$0xf]
      %v202 = vld [vmem:[%s1 + $0x70] sm:$0xf]
      %v203 = vld [vmem:[%s1 + $0x74] sm:$0xf]
      %v204 = vld [vmem:[%s1 + $0x78] sm:$0xf]
      %v205 = vld [vmem:[%s1 + $0x7c] sm:$0xf]
      %v238 = vunpack.c.l.b16 %v174
      %v239 = vunpack.c.l.b16 %v175
      %v240 = vunpack.c.l.b16 %v176
      %v241 = vunpack.c.l.b16 %v177
      %v242 = vunpack.c.l.b16 %v178
      %v243 = vunpack.c.l.b16 %v179
      %v244 = vunpack.c.l.b16 %v180
      %v245 = vunpack.c.l.b16 %v181
      %v246 = vunpack.c.l.b16 %v182
      %v247 = vunpack.c.l.b16 %v183
      %v248 = vunpack.c.l.b16 %v184
      %v249 = vunpack.c.l.b16 %v185
      %v250 = vunpack.c.l.b16 %v186
      %v251 = vunpack.c.l.b16 %v187
      %v252 = vunpack.c.l.b16 %v188
      %v253 = vunpack.c.l.b16 %v189
      %v254 = vunpack.c.l.b16 %v190
      %v255 = vunpack.c.l.b16 %v191
      %v256 = vunpack.c.l.b16 %v192
      %v257 = vunpack.c.l.b16 %v193
      %v258 = vunpack.c.l.b16 %v194
      %v259 = vunpack.c.l.b16 %v195
      %v260 = vunpack.c.l.b16 %v196
      %v261 = vunpack.c.l.b16 %v197
      %v262 = vunpack.c.l.b16 %v198
      %v263 = vunpack.c.l.b16 %v199
      %v264 = vunpack.c.l.b16 %v200
      %v265 = vunpack.c.l.b16 %v201
      %v266 = vunpack.c.l.b16 %v202
      %v267 = vunpack.c.l.b16 %v203
      %v268 = vunpack.c.l.b16 %v204
      %v269 = vunpack.c.l.b16 %v205
      %v270 = vpack.c.b16 %v239, %v238
      %v271 = vpack.c.b16 %v241, %v240
      %v272 = vpack.c.b16 %v243, %v242
      %v273 = vpack.c.b16 %v245, %v244
      %v274 = vpack.c.b16 %v247, %v246
      %v275 = vpack.c.b16 %v249, %v248
      %v276 = vpack.c.b16 %v251, %v250
      %v277 = vpack.c.b16 %v253, %v252
      %v278 = vpack.c.b16 %v255, %v254
      %v279 = vpack.c.b16 %v257, %v256
      %v280 = vpack.c.b16 %v259, %v258
      %v281 = vpack.c.b16 %v261, %v260
      %v282 = vpack.c.b16 %v263, %v262
      %v283 = vpack.c.b16 %v265, %v264
      %v284 = vpack.c.b16 %v267, %v266
      %v285 = vpack.c.b16 %v269, %v268
      %302 = vmatprep.subr.bf16.mxu0 0
      %303 = vmatpush1.bf16.msra.mxu0 %v270
      %304 = vmatprep.subr.bf16.mxu0 0
      %305 = vmatpush1.bf16.msra.mxu0 %v271
      %306 = vmatprep.subr.bf16.mxu0 0
      %307 = vmatpush1.bf16.msra.mxu0 %v272
      %308 = vmatprep.subr.bf16.mxu0 0
      %309 = vmatpush1.bf16.msra.mxu0 %v273
      %310 = vmatprep.subr.bf16.mxu0 0
      %311 = vmatpush1.bf16.msra.mxu0 %v274
      %312 = vmatprep.subr.bf16.mxu0 0
      %313 = vmatpush1.bf16.msra.mxu0 %v275
      %314 = vmatprep.subr.bf16.mxu0 0
      %315 = vmatpush1.bf16.msra.mxu0 %v276
      %316 = vmatprep.subr.bf16.mxu0 0
      %317 = vmatpush1.bf16.msra.mxu0 %v277
      %318 = vmatprep.subr.bf16.mxu0 0
      %319 = vmatpush1.bf16.msra.mxu0 %v278
      %320 = vmatprep.subr.bf16.mxu0 0
      %321 = vmatpush1.bf16.msra.mxu0 %v279
      %322 = vmatprep.subr.bf16.mxu0 0
      %323 = vmatpush1.bf16.msra.mxu0 %v280
      %324 = vmatprep.subr.bf16.mxu0 0
      %325 = vmatpush1.bf16.msra.mxu0 %v281
      %326 = vmatprep.subr.bf16.mxu0 0
      %327 = vmatpush1.bf16.msra.mxu0 %v282
      %328 = vmatprep.subr.bf16.mxu0 0
      %329 = vmatpush1.bf16.msra.mxu0 %v283
      %330 = vmatprep.subr.bf16.mxu0 0
      %331 = vmatpush1.bf16.msra.mxu0 %v284
      %332 = vmatprep.subr.bf16.mxu0 0
      %333 = vmatpush1.bf16.msra.mxu0 %v285
      %334 = vmatprep.mubr.bf16.mxu0 %v173
      %335 = vmatmul.mubr.bf16.gmra.mrb[0].mxu0 %v172
      %v336 = vpop.f32.mrb[0].mxu0
      %v337 = vadd.f32 0.0, %v336
      %v338 = vpop.f32.mrb[0].mxu0
      %v339 = vpop.f32.mrb[0].mxu0
      %v340 = vpop.f32.mrb[0].mxu0
      %341 = vdwg.mxu0
      %v342 = vld [vmem:[%s0] sm:$0x3f]
      %vm343 = vcmask 64512
      %v345 = vsel %vm343, %v342, 0
      %347 = vmatprep.subr.mxu0 0.0
      %348 = vmatpush1.msra.mxu0 %v337
      %349 = vmatprep.subr.mxu0 0.0
      %350 = vmatpush1.msra.mxu0 0.0
      %351 = vmatprep.subr.mxu0 0.0
      %352 = vmatpush1.msra.mxu0 0.0
      %353 = vmatprep.subr.mxu0 0.0
      %354 = vmatpush1.msra.mxu0 0.0
      %355 = vmatprep.subr.mxu0 0.0
      %356 = vmatpush1.msra.mxu0 0.0
      %357 = vmatprep.subr.mxu0 0.0
      %358 = vmatpush1.msra.mxu0 0.0
      %359 = vmatprep.subr.mxu0 0.0
      %360 = vmatpush1.msra.mxu0 0.0
      %361 = vmatprep.subr.mxu0 0.0
      %362 = vmatpush1.msra.mxu0 0.0
      %363 = vmatprep.subr.mxu0 0.0
      %364 = vmatpush1.msra.mxu0 0.0
      %365 = vmatprep.subr.mxu0 0.0
      %366 = vmatpush1.msra.mxu0 0.0
      %367 = vmatprep.subr.mxu0 0.0
      %368 = vmatpush1.msra.mxu0 0.0
      %369 = vmatprep.subr.mxu0 0.0
      %370 = vmatpush1.msra.mxu0 0.0
      %371 = vmatprep.subr.mxu0 0.0
      %372 = vmatpush1.msra.mxu0 0.0
      %373 = vmatprep.subr.mxu0 0.0
      %374 = vmatpush1.msra.mxu0 0.0
      %375 = vmatprep.subr.mxu0 0.0
      %376 = vmatpush1.msra.mxu0 0.0
      %377 = vmatprep.subr.mxu0 0.0
      %378 = vmatpush1.msra.mxu0 0.0
      %379 = vmatprep.subr.mxu0 0.0
      %380 = vmatpush1.msra.mxu0 0.0
      %381 = vmatprep.subr.mxu0 0.0
      %382 = vmatpush1.msra.mxu0 0.0
      %383 = vmatprep.subr.mxu0 0.0
      %384 = vmatpush1.msra.mxu0 0.0
      %385 = vmatprep.subr.mxu0 0.0
      %386 = vmatpush1.msra.mxu0 0.0
      %387 = vmatprep.subr.mxu0 0.0
      %388 = vmatpush1.msra.mxu0 0.0
      %389 = vmatprep.subr.mxu0 0.0
      %390 = vmatpush1.msra.mxu0 0.0
      %391 = vmatprep.subr.mxu0 0.0
      %392 = vmatpush1.msra.mxu0 0.0
      %393 = vmatprep.subr.mxu0 0.0
      %394 = vmatpush1.msra.mxu0 0.0
      %395 = vmatprep.subr.mxu0 0.0
      %396 = vmatpush1.msra.mxu0 0.0
      %397 = vmatprep.subr.mxu0 0.0
      %398 = vmatpush1.msra.mxu0 0.0
      %399 = vmatprep.subr.mxu0 0.0
      %400 = vmatpush1.msra.mxu0 0.0
      %401 = vmatprep.subr.mxu0 0.0
      %402 = vmatpush1.msra.mxu0 0.0
      %403 = vmatprep.subr.mxu0 0.0
      %404 = vmatpush1.msra.mxu0 0.0
      %405 = vmatprep.subr.mxu0 0.0
      %406 = vmatpush1.msra.mxu0 0.0
      %407 = vmatprep.subr.mxu0 0.0
      %408 = vmatpush1.msra.mxu0 0.0
      %409 = vmatprep.subr.mxu0 0.0
      %410 = vmatpush1.msra.mxu0 0.0
      %411 = vmatprep.mubr.f32.mxu0 0.0
      %412 = vmatmul.mubr.f32.gmra.mrb[0].mxu0 %v345
      %v413 = vpop.f32.mrb[0].mxu0
      %v414 = vadd.f32 0.0, %v413
      %v415 = vpop.f32.mrb[0].mxu0
      %416 = vdwg.mxu0
      %vm417 = vcmask 521216
      %418 = vst.msk [vmem:[%s168] sm:$0x3f] %vm417, %v414
      %p419 = scmp.lt.s32.totalorder %s14, 1
      %s420 = scalar_select %p419, %s14, 1
      %s421 = smul.addr %s420, 8
      %s422 = scalar_lea.vmem %s3, %s421
      // Predicated region
      $region33: #{tpu_custom_call.1} parent=31 // pred_check
        %p423 = pneg %p100
      $region34: #{tpu_custom_call.1} parent=31 // pred_check_branch
        %425 = sbr.rel (%p423) target = $region36
      $region35: #{tpu_custom_call.1} parent=31 // pred_region
        _
      $region36: #{tpu_custom_call.1} parent=31 // pred_fallthru
        _
    $region32: #{tpu_custom_call.1} parent=5 // pred_fallthru
      _
    %p426 = scmp.le.s32.totalorder 2, %s9
    // Predicated region
    $region37: #{tpu_custom_call.1} parent=5 // pred_check
      %p427 = pneg %p426
    $region38: #{tpu_custom_call.1} parent=5 // pred_check_branch
      %429 = sbr.rel (%p427) target = $region40
    $region39: #{tpu_custom_call.1} parent=5 // pred_region
      %s430 = ssub.s32 %s9, 2
      // Predicated region
      $region41: #{tpu_custom_call.1} parent=39 // pred_check
        %p431 = pneg %p106
      $region42: #{tpu_custom_call.1} parent=39 // pred_check_branch
        %433 = sbr.rel (%p431) target = $region44
      $region43: #{tpu_custom_call.1} parent=39 // pred_region
        %p434 = scmp.lt.s32.totalorder %s15, 1
        %s435 = scalar_select %p434, %s15, 1
        %s436 = smul.addr %s435, 8
        %s437 = scalar_lea.vmem %s3, %s436
      $region44: #{tpu_custom_call.1} parent=39 // pred_fallthru
        _
    $region40: #{tpu_custom_call.1} parent=5 // pred_fallthru
      _
  $region6: #{tpu_custom_call.1} parent=0 // loop_footer
    %s13 = sadd.s32 1, %s9
  $region7: #{tpu_custom_call.1} parent=0 // loop_footer_branch
    %8 = sbr.rel target = $region3
  $region8: #{tpu_custom_call.1} parent=0 // loop_exit
    _

</llo_original>
